<compile_context>
chip_gen: v6e
topology: v6e:2x2x1
jax: 0.10.0
libtpu: 0.0.40
codegen_flags: <defaults>
</compile_context>

<pallas_src>
import jax
import jax.numpy as jnp
from jax.experimental import pallas as pl
from jax.experimental.pallas import tpu as pltpu


def _round_up(a, b):
    return (a + b - 1) // b * b


def _mlp_kernel(x_ref, w1_ref, b1_ref, w2_ref, b2_ref, o_ref, acc_ref):
    # x_ref : (TM, D)   compute-dtype (bf16) row tile
    # w1_ref: (D, TH)   hidden-column slice of denseLayer weight
    # b1_ref: (1, TH)   f32 slice of denseLayer bias
    # w2_ref: (TH, D)   hidden-row slice of outputLayer weight
    # b2_ref: (1, D)    f32 outputLayer bias
    # o_ref : (TM, D)   output tile (written only on last hidden step)
    # acc_ref:(TM, D)   f32 accumulator, resident across the hidden grid axis
    j = pl.program_id(1)

    @pl.when(j == 0)
    def _init():
        # Fold the output bias into the accumulator init (added exactly once).
        acc_ref[...] = jnp.broadcast_to(b2_ref[...], acc_ref.shape)

    x = x_ref[...]
    # denseLayer slice: bf16 MXU operands, f32 accumulation.
    h = jnp.dot(x, w1_ref[...], preferred_element_type=jnp.float32)
    h = h + b1_ref[...]
    # activationFunction: exact erf GELU (matches torch.nn.GELU() default), in f32.
    h = 0.5 * h * (1.0 + jax.lax.erf(h * jnp.float32(0.7071067811865476)))
    # outputLayer slice: accumulate partial products over hidden tiles.
    acc_ref[...] += jnp.dot(h.astype(x.dtype), w2_ref[...],
                            preferred_element_type=jnp.float32)

    @pl.when(j == pl.num_programs(1) - 1)
    def _finalize():
        # dropoutLayer: identity in eval/inference mode.
        # TODO(synk): training-mode dropout (random masking) not implemented.
        o_ref[...] = acc_ref[...].astype(o_ref.dtype)


def neural_network_forward(x, w1, b1, w2, b2, *, tile_m=256, tile_h=512,
                           compute_dtype=jnp.bfloat16):
    """MLP forward: GELU(x @ W1 + b1) @ W2 + b2.

    x  : (..., D)
    w1 : (D, 4D), b1 : (4D,)
    w2 : (4D, D), b2 : (D,)
    """
    orig_shape = x.shape
    out_dtype = x.dtype
    d = orig_shape[-1]
    hidden = w1.shape[1]

    x2 = x.reshape(-1, d)
    m = x2.shape[0]

    # --- Row (M) tiling: one full block for small M, padded 256-row tiles otherwise.
    tile_m_eff = _round_up(m, 8) if m <= tile_m else tile_m
    m_pad = _round_up(m, tile_m_eff)
    if m_pad != m:
        x2 = jnp.pad(x2, ((0, m_pad - m), (0, 0)))  # padded rows are discarded below

    # --- Hidden (H) tiling: bounds resident weight bytes (v7x has 64 MiB VMEM).
    tile_h_eff = min(_round_up(tile_h, 128), _round_up(hidden, 128))
    h_pad = _round_up(hidden, tile_h_eff)
    if h_pad != hidden:
        # Zero-padded hidden units contribute nothing: GELU(x@0 + 0) @ 0 == 0.
        w1 = jnp.pad(w1, ((0, 0), (0, h_pad - hidden)))
        b1 = jnp.pad(b1, ((0, h_pad - hidden),))
        w2 = jnp.pad(w2, ((0, h_pad - hidden), (0, 0)))

    # bf16 MXU operands; accumulation, bias adds and GELU stay in f32.
    x2 = x2.astype(compute_dtype)
    w1c = w1.astype(compute_dtype)
    w2c = w2.astype(compute_dtype)
    b1_2d = b1.reshape(1, h_pad).astype(jnp.float32)
    b2_2d = b2.reshape(1, d).astype(jnp.float32)

    grid = (m_pad // tile_m_eff, h_pad // tile_h_eff)

    cb = jnp.dtype(compute_dtype).itemsize
    # 2x for double-buffered BlockSpec tiles, plus the f32 accumulator scratch.
    vmem_bytes = 2 * (tile_m_eff * d * cb            # x tile
                      + d * tile_h_eff * cb          # W1 tile
                      + tile_h_eff * 4               # b1 tile
                      + tile_h_eff * d * cb          # W2 tile
                      + d * 4                        # b2
                      + tile_m_eff * d * 4)          # out tile
    vmem_bytes += tile_m_eff * d * 4                 # accumulator
    vmem_limit = int(min(max(2 * vmem_bytes + (4 << 20), 16 << 20), 96 << 20))

    cost = pl.CostEstimate(
        flops=4 * m_pad * d * h_pad,                 # two matmuls: 2*M*D*H each
        transcendentals=m_pad * h_pad,               # erf
        bytes_accessed=(m_pad * d * cb + d * h_pad * cb + h_pad * d * cb
                        + h_pad * 4 + d * 4 + m_pad * d * 4),
    )

    # NOTE: D=32 keeps only a quarter of the 128-lane vreg busy on loads/stores;
    # acceptable at toy size — real models with D>=128 get lane-dense tiles for free.
    out = pl.pallas_call(
        _mlp_kernel,
        out_shape=jax.ShapeDtypeStruct((m_pad, d), out_dtype),
        grid_spec=pltpu.PrefetchScalarGridSpec(
            num_scalar_prefetch=0,
            grid=grid,
            in_specs=[
                pl.BlockSpec((tile_m_eff, d), lambda i, j: (i, 0)),   # x row tile
                pl.BlockSpec((d, tile_h_eff), lambda i, j: (0, j)),   # W1 column slice
                pl.BlockSpec((1, tile_h_eff), lambda i, j: (0, j)),   # b1 slice
                pl.BlockSpec((tile_h_eff, d), lambda i, j: (j, 0)),   # W2 row slice
                pl.BlockSpec((1, d), lambda i, j: (0, 0)),            # b2
            ],
            out_specs=pl.BlockSpec((tile_m_eff, d), lambda i, j: (i, 0)),
            scratch_shapes=[pltpu.VMEM((tile_m_eff, d), jnp.float32)],
        ),
        compiler_params=pltpu.CompilerParams(
            dimension_semantics=("parallel", "arbitrary"),
            vmem_limit_bytes=vmem_limit,
        ),
        cost_estimate=cost,
    )(x2, w1c, b1_2d, w2c, b2_2d)

    if m_pad != m:
        out = out[:m]
    return out.reshape(orig_shape)


def _reference(x, w1, b1, w2, b2):
    h = x @ w1 + b1
    h = jax.nn.gelu(h, approximate=False)
    return h @ w2 + b2


if __name__ == "__main__":
    # neuroConfig.neuronDensity = 32 (hidden = 128), useBias = True,
    # dropoutRate ignored at inference.
    B, S, D = 2, 8, 32
    H = 4 * D

    key = jax.random.PRNGKey(0)
    kx, kw1, kb1, kw2, kb2 = jax.random.split(key, 5)

    x = jax.random.normal(kx, (B, S, D), dtype=jnp.float32)

    # Deterministic init mimicking nn.Linear's uniform(-1/sqrt(fan_in), 1/sqrt(fan_in)).
    # Weights stored as (in, out) so the kernel computes x @ W directly.
    lim1 = 1.0 / jnp.sqrt(jnp.float32(D))
    lim2 = 1.0 / jnp.sqrt(jnp.float32(H))
    w1 = jax.random.uniform(kw1, (D, H), jnp.float32, -lim1, lim1)
    b1 = jax.random.uniform(kb1, (H,), jnp.float32, -lim1, lim1)
    w2 = jax.random.uniform(kw2, (H, D), jnp.float32, -lim2, lim2)
    b2 = jax.random.uniform(kb2, (D,), jnp.float32, -lim2, lim2)

    y = neural_network_forward(x, w1, b1, w2, b2)
    y = jax.block_until_ready(y)

    y_ref = _reference(x, w1, b1, w2, b2)
    assert y.shape == (B, S, D)
    # bf16 MXU operands with f32 accumulation -> loosened tolerance vs f32 reference.
    assert jnp.allclose(y, y_ref, atol=3e-2, rtol=3e-2), "mismatch vs reference"

    print("KERNEL_OK")
</pallas_src>

<mosaic_0001>
module attributes {stable_mosaic.version = 11 : i64} {
  func.func @_mlp_kernel(%arg0: i32, %arg1: i32, %arg2: memref<16x32xbf16, #tpu.memory_space<vmem>>, %arg3: memref<32x128xbf16, #tpu.memory_space<vmem>>, %arg4: memref<1x128xf32, #tpu.memory_space<vmem>>, %arg5: memref<128x32xbf16, #tpu.memory_space<vmem>>, %arg6: memref<1x32xf32, #tpu.memory_space<vmem>>, %arg7: memref<16x32xf32, #tpu.memory_space<vmem>>, %arg8: memref<16x32xf32, #tpu.memory_space<vmem>>) attributes {dimension_semantics = [#tpu.dimension_semantics<parallel>, #tpu.dimension_semantics<arbitrary>], iteration_bounds = array<i64: 1, 1>, scalar_prefetch = 0 : i64, scratch_operands = 1 : i64, tpu.core_type = #tpu.core_type<tc>, window_params = [{transform_indices = @transform_0, window_bounds = array<i64: 16, 32>}, {transform_indices = @transform_1, window_bounds = array<i64: 32, 128>}, {transform_indices = @transform_2, window_bounds = array<i64: 1, 128>}, {transform_indices = @transform_3, window_bounds = array<i64: 128, 32>}, {pipeline_mode = #tpu.pipeline_mode<synchronous>, transform_indices = @transform_4, window_bounds = array<i64: 1, 32>}, {transform_indices = @transform_5, window_bounds = array<i64: 16, 32>}]} {
    %c0_i32 = arith.constant 0 : i32
    %0 = arith.cmpi eq, %arg1, %c0_i32 : i32
    %1 = arith.extui %0 : i1 to i32
    %c0_i32_0 = arith.constant 0 : i32
    %2 = arith.cmpi ne, %1, %c0_i32_0 : i32
    scf.if %2 {
      %c0_18 = arith.constant 0 : index
      %c0_19 = arith.constant 0 : index
      %26 = vector.load %arg6[%c0_18, %c0_19] : memref<1x32xf32, #tpu.memory_space<vmem>>, vector<1x32xf32>
      %27 = vector.shape_cast %26 : vector<1x32xf32> to vector<1x32xf32>
      %28 = vector.broadcast %27 : vector<1x32xf32> to vector<16x32xf32>
      %c0_20 = arith.constant 0 : index
      %c0_21 = arith.constant 0 : index
      %29 = vector.load %arg8[%c0_20, %c0_21] : memref<16x32xf32, #tpu.memory_space<vmem>>, vector<16x32xf32>
      tpu.vector_store %arg8[%c0_20, %c0_21], %28 {strides = array<i32>} : memref<16x32xf32, #tpu.memory_space<vmem>>, vector<16x32xf32>,
    } else {
    }
    %c0 = arith.constant 0 : index
    %c0_1 = arith.constant 0 : index
    %3 = vector.load %arg2[%c0, %c0_1] : memref<16x32xbf16, #tpu.memory_space<vmem>>, vector<16x32xbf16>
    %c0_2 = arith.constant 0 : index
    %c0_3 = arith.constant 0 : index
    %4 = vector.load %arg3[%c0_2, %c0_3] : memref<32x128xbf16, #tpu.memory_space<vmem>>, vector<32x128xbf16>
    %cst = arith.constant dense<0.000000e+00> : vector<16x128xf32>
    %5 = tpu.matmul %3, %4, %cst {dimension_numbers = #tpu.dot_dimension_numbers<[1], [0], [0], [1], [0, 0, 1, 1], [], []>} : vector<16x32xbf16>, vector<32x128xbf16>, vector<16x128xf32> -> vector<16x128xf32>
    %c0_4 = arith.constant 0 : index
    %c0_5 = arith.constant 0 : index
    %6 = vector.load %arg4[%c0_4, %c0_5] : memref<1x128xf32, #tpu.memory_space<vmem>>, vector<1x128xf32>
    %7 = vector.broadcast %6 : vector<1x128xf32> to vector<16x128xf32>
    %8 = arith.addf %5, %7 : vector<16x128xf32>
    %cst_6 = arith.constant 5.000000e-01 : f32
    %9 = vector.broadcast %cst_6 : f32 to vector<16x128xf32>
    %10 = arith.mulf %9, %8 : vector<16x128xf32>
    %cst_7 = arith.constant 0.707106769 : f32
    %11 = vector.broadcast %cst_7 : f32 to vector<16x128xf32>
    %12 = arith.mulf %8, %11 : vector<16x128xf32>
    %13 = math.erf %12 : vector<16x128xf32>
    %cst_8 = arith.constant 1.000000e+00 : f32
    %14 = vector.broadcast %cst_8 : f32 to vector<16x128xf32>
    %15 = arith.addf %14, %13 : vector<16x128xf32>
    %16 = arith.mulf %10, %15 : vector<16x128xf32>
    %c0_9 = arith.constant 0 : index
    %c0_10 = arith.constant 0 : index
    %17 = vector.load %arg8[%c0_9, %c0_10] : memref<16x32xf32, #tpu.memory_space<vmem>>, vector<16x32xf32>
    %18 = arith.truncf %16 : vector<16x128xf32> to vector<16x128xbf16>
    %c0_11 = arith.constant 0 : index
    %c0_12 = arith.constant 0 : index
    %19 = vector.load %arg5[%c0_11, %c0_12] : memref<128x32xbf16, #tpu.memory_space<vmem>>, vector<128x32xbf16>
    %cst_13 = arith.constant dense<0.000000e+00> : vector<16x32xf32>
    %20 = tpu.matmul %18, %19, %cst_13 {dimension_numbers = #tpu.dot_dimension_numbers<[1], [0], [0], [1], [0, 0, 1, 1], [], []>} : vector<16x128xbf16>, vector<128x32xbf16>, vector<16x32xf32> -> vector<16x32xf32>
    %21 = arith.addf %17, %20 : vector<16x32xf32>
    %c0_14 = arith.constant 0 : index
    %c0_15 = arith.constant 0 : index
    %22 = vector.load %arg8[%c0_14, %c0_15] : memref<16x32xf32, #tpu.memory_space<vmem>>, vector<16x32xf32>
    tpu.vector_store %arg8[%c0_14, %c0_15], %21 {strides = array<i32>} : memref<16x32xf32, #tpu.memory_space<vmem>>, vector<16x32xf32>,
    %c0_i32_16 = arith.constant 0 : i32
    %23 = arith.cmpi eq, %arg1, %c0_i32_16 : i32
    %24 = arith.extui %23 : i1 to i32
    %c0_i32_17 = arith.constant 0 : i32
    %25 = arith.cmpi ne, %24, %c0_i32_17 : i32
    scf.if %25 {
      %c0_18 = arith.constant 0 : index
      %c0_19 = arith.constant 0 : index
      %26 = vector.load %arg8[%c0_18, %c0_19] : memref<16x32xf32, #tpu.memory_space<vmem>>, vector<16x32xf32>
      %c0_20 = arith.constant 0 : index
      %c0_21 = arith.constant 0 : index
      %27 = vector.load %arg7[%c0_20, %c0_21] : memref<16x32xf32, #tpu.memory_space<vmem>>, vector<16x32xf32>
      tpu.vector_store %arg7[%c0_20, %c0_21], %26 {strides = array<i32>} : memref<16x32xf32, #tpu.memory_space<vmem>>, vector<16x32xf32>,
    } else {
    }
    return
  }
  func.func @transform_0(%arg0: i32, %arg1: i32) -> (i32, i32) {
    %c0_i32 = arith.constant 0 : i32
    %c0_i32_0 = arith.constant 0 : i32
    return %arg0, %c0_i32 : i32, i32
  }
  func.func @transform_1(%arg0: i32, %arg1: i32) -> (i32, i32) {
    %c0_i32 = arith.constant 0 : i32
    %c0_i32_0 = arith.constant 0 : i32
    return %c0_i32, %arg1 : i32, i32
  }
  func.func @transform_2(%arg0: i32, %arg1: i32) -> (i32, i32) {
    %c0_i32 = arith.constant 0 : i32
    %c0_i32_0 = arith.constant 0 : i32
    return %c0_i32, %arg1 : i32, i32
  }
  func.func @transform_3(%arg0: i32, %arg1: i32) -> (i32, i32) {
    %c0_i32 = arith.constant 0 : i32
    %c0_i32_0 = arith.constant 0 : i32
    return %arg1, %c0_i32 : i32, i32
  }
  func.func @transform_4(%arg0: i32, %arg1: i32) -> (i32, i32) {
    %c0_i32 = arith.constant 0 : i32
    %c0_i32_0 = arith.constant 0 : i32
    %c0_i32_1 = arith.constant 0 : i32
    return %c0_i32, %c0_i32_0 : i32, i32
  }
  func.func @transform_5(%arg0: i32, %arg1: i32) -> (i32, i32) {
    %c0_i32 = arith.constant 0 : i32
    %c0_i32_0 = arith.constant 0 : i32
    return %arg0, %c0_i32 : i32, i32
  }
}

</mosaic_0001>

<llo_original>
// kernel: tpu_custom_call.1
$region0: #{tpu_custom_call.1}
  #allocation0 [shape = 'u32[]', space=smem, size = 0x4, offset = 0x4, fixed_abs, tag = 'smem constant byte address 0x4 - core index']
  #allocation1 [shape = 'u32[144,128]{1,0:T(1,128)}', space=vmem, size = 0x12000, scoped, tag = 'internal scratch']
  #allocation2 [shape = 'f32[16,32]{1,0:T(8,128)}', space=vmem, size = 0x2000, scoped, tag = 'scratch operand']
  %s0 = inlined_call_operand.vmem [shape: bf16[16,32], index: 0, kind: input, shape index: {}]
  %s1 = inlined_call_operand.vmem [shape: bf16[32,128], index: 1, kind: input, shape index: {}]
  %s2 = inlined_call_operand.vmem [shape: f32[1,128], index: 2, kind: input, shape index: {}]
  %s3 = inlined_call_operand.vmem [shape: bf16[128,32], index: 3, kind: input, shape index: {}]
  %s4 = inlined_call_operand.vmem [shape: f32[1,32], index: 4, kind: input, shape index: {}]
  %s5 = inlined_call_operand.hbm [shape: f32[16,32], index: 5, kind: output, shape index: {}]
  %s6 = sld [smem:[#allocation0]]
  $region38: #{tpu_custom_call.1} parent=0
    _
  %s8 = ssub.s32 1, %s6
  %s9 = scalar_select 0, %s8, %s6
  $region1: #{tpu_custom_call.1} parent=0
    #allocation3 [shape = 'u8[8192]{0}', space=vmem, size = 0x2000, scoped, tag = 'output window, operand 0, single buffered']
    #allocation4 [shape = 's32[1]{0}', space=sflag, size = 0x4, scoped, tag = 'scoped memory for tpu_custom_call.1']
    %10 = vsyncpa [#allocation4], 0
    // Predicated region
    $region2: #{tpu_custom_call.1} parent=1 // pred_check
      _
    $region3: #{tpu_custom_call.1} parent=1 // pred_check_branch
      %12 = sbr.rel (0) target = $region5
    $region4: #{tpu_custom_call.1} parent=1 // pred_region
      _
    $region5: #{tpu_custom_call.1} parent=1 // pred_fallthru
      _
    // Predicated region
    $region6: #{tpu_custom_call.1} parent=1 // pred_check
      _
    $region7: #{tpu_custom_call.1} parent=1 // pred_check_branch
      %14 = sbr.rel (0) target = $region9
    $region8: #{tpu_custom_call.1} parent=1 // pred_region
      _
    $region9: #{tpu_custom_call.1} parent=1 // pred_fallthru
      _
    // Predicated region
    $region10: #{tpu_custom_call.1} parent=1 // pred_check
      _
    $region11: #{tpu_custom_call.1} parent=1 // pred_check_branch
      %16 = sbr.rel (0) target = $region13
    $region12: #{tpu_custom_call.1} parent=1 // pred_region
      _
    $region13: #{tpu_custom_call.1} parent=1 // pred_fallthru
      _
    // Predicated region
    $region14: #{tpu_custom_call.1} parent=1 // pred_check
      _
    $region15: #{tpu_custom_call.1} parent=1 // pred_check_branch
      %18 = sbr.rel (0) target = $region17
    $region16: #{tpu_custom_call.1} parent=1 // pred_region
      _
    $region17: #{tpu_custom_call.1} parent=1 // pred_fallthru
      _
    // Predicated region
    $region18: #{tpu_custom_call.1} parent=1 // pred_check
      _
    $region19: #{tpu_custom_call.1} parent=1 // pred_check_branch
      %20 = sbr.rel (0) target = $region21
    $region20: #{tpu_custom_call.1} parent=1 // pred_region
      _
    $region21: #{tpu_custom_call.1} parent=1 // pred_fallthru
      _
    %p22 = scmp.eq.s32.totalorder 0, 0
    // Predicated region
    $region22: #{tpu_custom_call.1} parent=1 // pred_check
      %p23 = pneg %p22
    $region23: #{tpu_custom_call.1} parent=1 // pred_check_branch
      %25 = sbr.rel (%p23) target = $region25
    $region24: #{tpu_custom_call.1} parent=1 // pred_region
      %v26 = vld [vmem:[%s4] sm:$0x1]
      %v28 = vlaneseq
      %v29 = vshrl.u32 %v28, 7
      %v30 = vsub.s32 0, %v29
      %v31 = vrot.slane %v26, %v30
      %vm33 = vcmask 261120
      %34 = vst.msk [vmem:[#allocation2] sm:$0xff] %vm33, %v31
      %35 = vst.msk [vmem:[#allocation2 + $0x8] sm:$0xff] %vm33, %v31
    $region25: #{tpu_custom_call.1} parent=1 // pred_fallthru
      _
    %v36 = vld [vmem:[%s0] sm:$0xf]
    %v37 = vld [vmem:[%s0 + $0x4] sm:$0xf]
    %v38 = vld [vmem:[%s1] sm:$0xf]
    %v39 = vld [vmem:[%s1 + $0x4] sm:$0xf]
    %v40 = vld [vmem:[%s1 + $0x8] sm:$0xf]
    %v41 = vld [vmem:[%s1 + $0xc] sm:$0xf]
    %v42 = vld [vmem:[%s2] sm:$0x1]
    %v44 = vlaneseq
    %v45 = vshrl.u32 %v44, 7
    %v46 = vsub.s32 0, %v45
    %v47 = vrot.slane %v42, %v46
    %v51 = vunpack.c.l.b16 %v36
    %v52 = vunpack.c.l.b16 %v37
    %v53 = vpack.c.b16 %v52, %v51
    %v58 = vunpack.c.l.b16 %v38
    %v59 = vunpack.c.l.b16 %v39
    %v60 = vunpack.c.l.b16 %v40
    %v61 = vunpack.c.l.b16 %v41
    %v62 = vpack.c.b16 %v59, %v58
    %v63 = vpack.c.b16 %v61, %v60
    %vm66 = vcmask 261120
    %v68 = vsel %vm66, %v53, 0
    %70 = vmatprep.subr.bf16.mxu0 0
    %71 = vmatpush1.bf16.msra.mxu0 0
    %72 = vmatprep.subr.bf16.mxu0 0
    %73 = vmatpush1.bf16.msra.mxu0 0
    %74 = vmatprep.subr.bf16.mxu0 0
    %75 = vmatpush1.bf16.msra.mxu0 0
    %76 = vmatprep.subr.bf16.mxu0 0
    %77 = vmatpush1.bf16.msra.mxu0 0
    %78 = vmatprep.subr.bf16.mxu0 0
    %79 = vmatpush1.bf16.msra.mxu0 0
    %80 = vmatprep.subr.bf16.mxu0 0
    %81 = vmatpush1.bf16.msra.mxu0 0
    %82 = vmatprep.subr.bf16.mxu0 0
    %83 = vmatpush1.bf16.msra.mxu0 %v63
    %84 = vmatprep.subr.bf16.mxu0 0
    %85 = vmatpush1.bf16.msra.mxu0 %v62
    %86 = vmatprep.subr.bf16.mxu0 0
    %87 = vmatpush2.bf16.msra.mxu0 0
    %88 = vmatprep.subr.bf16.mxu0 0
    %89 = vmatpush2.bf16.msra.mxu0 0
    %90 = vmatprep.subr.bf16.mxu0 0
    %91 = vmatpush2.bf16.msra.mxu0 0
    %92 = vmatprep.subr.bf16.mxu0 0
    %93 = vmatpush2.bf16.msra.mxu0 0
    %94 = vmatprep.subr.bf16.mxu0 0
    %95 = vmatpush2.bf16.msra.mxu0 0
    %96 = vmatprep.subr.bf16.mxu0 0
    %97 = vmatpush2.bf16.msra.mxu0 0
    %98 = vmatprep.subr.bf16.mxu0 0
    %99 = vmatpush2.bf16.msra.mxu0 0
    %100 = vmatprep.subr.bf16.mxu0 0
    %101 = vmatpush2.bf16.msra.mxu0 0
    %102 = vmatprep.mubr.bf16.mxu0 0
    %103 = vmatmul.mubr.bf16.gmra.mxu0 %v68
    %v104 = vpop.f32.mrf.mxu0
    %v105 = vadd.f32 %v47, %v104
    %v106 = vpop.f32.mrf.mxu0
    %v107 = vpop.f32.mrf.mxu0
    %v108 = vadd.f32 %v47, %v107
    %v109 = vpop.f32.mrf.mxu0
    %110 = vdwg.mxu0
    %v111 = vmul.f32 %v105, 0.5
    %v112 = vmul.f32 %v108, 0.5
    %v113 = vmul.f32 %v105, 0.70710677
    %v114 = vmul.f32 %v108, 0.70710677
    %v115 = verf.f32.pop %v113
    %v116 = verf.f32.pop %v114
    %v117 = vadd.f32 %v115, 1.0
    %v118 = vadd.f32 %v116, 1.0
    %v119 = vmul.f32 %v111, %v117
    %v120 = vmul.f32 %v112, %v118
    %v121 = vld [vmem:[#allocation2] sm:$0xff]
    %v122 = vld [vmem:[#allocation2 + $0x8] sm:$0xff]
    %v123 = vpack.c.bf16 %v120, %v119
    %v124 = vld [vmem:[%s3] sm:$0xf]
    %v125 = vld [vmem:[%s3 + $0x4] sm:$0xf]
    %v126 = vld [vmem:[%s3 + $0x8] sm:$0xf]
    %v127 = vld [vmem:[%s3 + $0xc] sm:$0xf]
    %v128 = vld [vmem:[%s3 + $0x10] sm:$0xf]
    %v129 = vld [vmem:[%s3 + $0x14] sm:$0xf]
    %v130 = vld [vmem:[%s3 + $0x18] sm:$0xf]
    %v131 = vld [vmem:[%s3 + $0x1c] sm:$0xf]
    %v132 = vld [vmem:[%s3 + $0x20] sm:$0xf]
    %v133 = vld [vmem:[%s3 + $0x24] sm:$0xf]
    %v134 = vld [vmem:[%s3 + $0x28] sm:$0xf]
    %v135 = vld [vmem:[%s3 + $0x2c] sm:$0xf]
    %v136 = vld [vmem:[%s3 + $0x30] sm:$0xf]
    %v137 = vld [vmem:[%s3 + $0x34] sm:$0xf]
    %v138 = vld [vmem:[%s3 + $0x38] sm:$0xf]
    %v139 = vld [vmem:[%s3 + $0x3c] sm:$0xf]
    %v156 = vunpack.c.l.b16 %v124
    %v157 = vunpack.c.l.b16 %v125
    %v158 = vunpack.c.l.b16 %v126
    %v159 = vunpack.c.l.b16 %v127
    %v160 = vunpack.c.l.b16 %v128
    %v161 = vunpack.c.l.b16 %v129
    %v162 = vunpack.c.l.b16 %v130
    %v163 = vunpack.c.l.b16 %v131
    %v164 = vunpack.c.l.b16 %v132
    %v165 = vunpack.c.l.b16 %v133
    %v166 = vunpack.c.l.b16 %v134
    %v167 = vunpack.c.l.b16 %v135
    %v168 = vunpack.c.l.b16 %v136
    %v169 = vunpack.c.l.b16 %v137
    %v170 = vunpack.c.l.b16 %v138
    %v171 = vunpack.c.l.b16 %v139
    %v172 = vpack.c.b16 %v157, %v156
    %v173 = vpack.c.b16 %v159, %v158
    %v174 = vpack.c.b16 %v161, %v160
    %v175 = vpack.c.b16 %v163, %v162
    %v176 = vpack.c.b16 %v165, %v164
    %v177 = vpack.c.b16 %v167, %v166
    %v178 = vpack.c.b16 %v169, %v168
    %v179 = vpack.c.b16 %v171, %v170
    %188 = vmatprep.subr.bf16.mxu0 0
    %189 = vmatpush1.bf16.msra.mxu0 %v179
    %190 = vmatprep.subr.bf16.mxu0 0
    %191 = vmatpush1.bf16.msra.mxu0 %v178
    %192 = vmatprep.subr.bf16.mxu0 0
    %193 = vmatpush1.bf16.msra.mxu0 %v177
    %194 = vmatprep.subr.bf16.mxu0 0
    %195 = vmatpush1.bf16.msra.mxu0 %v176
    %196 = vmatprep.subr.bf16.mxu0 0
    %197 = vmatpush1.bf16.msra.mxu0 %v175
    %198 = vmatprep.subr.bf16.mxu0 0
    %199 = vmatpush1.bf16.msra.mxu0 %v174
    %200 = vmatprep.subr.bf16.mxu0 0
    %201 = vmatpush1.bf16.msra.mxu0 %v173
    %202 = vmatprep.subr.bf16.mxu0 0
    %203 = vmatpush1.bf16.msra.mxu0 %v172
    %204 = vmatprep.subr.bf16.mxu0 0
    %205 = vmatpush2.bf16.msra.mxu0 0
    %206 = vmatprep.subr.bf16.mxu0 0
    %207 = vmatpush2.bf16.msra.mxu0 0
    %208 = vmatprep.subr.bf16.mxu0 0
    %209 = vmatpush2.bf16.msra.mxu0 0
    %210 = vmatprep.subr.bf16.mxu0 0
    %211 = vmatpush2.bf16.msra.mxu0 0
    %212 = vmatprep.subr.bf16.mxu0 0
    %213 = vmatpush2.bf16.msra.mxu0 0
    %214 = vmatprep.subr.bf16.mxu0 0
    %215 = vmatpush2.bf16.msra.mxu0 0
    %216 = vmatprep.subr.bf16.mxu0 0
    %217 = vmatpush2.bf16.msra.mxu0 0
    %218 = vmatprep.subr.bf16.mxu0 0
    %219 = vmatpush2.bf16.msra.mxu0 0
    %220 = vmatprep.mubr.bf16.mxu0 0
    %221 = vmatmul.mubr.bf16.gmra.mxu0 %v123
    %v222 = vpop.f32.mrf.mxu0
    %v223 = vadd.f32 0.0, %v222
    %v224 = vpop.f32.mrf.mxu0
    %v225 = vpop.f32.mrf.mxu0
    %v226 = vadd.f32 0.0, %v225
    %v227 = vpop.f32.mrf.mxu0
    %228 = vdwg.mxu0
    %v229 = vadd.f32 %v121, %v223
    %v230 = vadd.f32 %v122, %v226
    %231 = vst.msk [vmem:[#allocation2] sm:$0xff] %vm66, %v229
    %232 = vst.msk [vmem:[#allocation2 + $0x8] sm:$0xff] %vm66, %v230
    // Predicated region
    $region26: #{tpu_custom_call.1} parent=1 // pred_check
      %p233 = pneg %p22
    $region27: #{tpu_custom_call.1} parent=1 // pred_check_branch
      %235 = sbr.rel (%p233) target = $region29
    $region28: #{tpu_custom_call.1} parent=1 // pred_region
      %v236 = vld [vmem:[#allocation2] sm:$0xff]
      %v237 = vld [vmem:[#allocation2 + $0x8] sm:$0xff]
      %238 = vst.msk [vmem:[#allocation3] sm:$0xff] %vm66, %v236
      %239 = vst.msk [vmem:[#allocation3 + $0x8] sm:$0xff] %vm66, %v237
    $region29: #{tpu_custom_call.1} parent=1 // pred_fallthru
      _
    // Predicated region
    $region30: #{tpu_custom_call.1} parent=1 // pred_check
      _
    $region31: #{tpu_custom_call.1} parent=1 // pred_check_branch
      %241 = sbr.rel (0) target = $region33
    $region32: #{tpu_custom_call.1} parent=1 // pred_region
      %s243 = ssub.s32 256, 256
      %244 = vsyncadd [#allocation4], %s243
      %s245 = sshll.u32 [#allocation3], 4
      %s246 = int_to_ptr.vmem [resolvable:$true] %s245
      %251 = dma.vmem_to_hbm [thread:$0]  %s246, 256, %s5, [#allocation4], 128, 128, 8
    $region33: #{tpu_custom_call.1} parent=1 // pred_fallthru
      _
    // Predicated region
    $region34: #{tpu_custom_call.1} parent=1 // pred_check
      _
    $region35: #{tpu_custom_call.1} parent=1 // pred_check_branch
      %253 = sbr.rel (0) target = $region37
    $region36: #{tpu_custom_call.1} parent=1 // pred_region
      %254 = dma.done [#allocation4], 256
    $region37: #{tpu_custom_call.1} parent=1 // pred_fallthru
      _
    %255 = vsyncpa [#allocation4], 1

</llo_original>
